<compile_context>
chip_gen: v5e
topology: v5e:2x2
jax: 0.10.0
libtpu: 0.0.40
codegen_flags: <defaults>
</compile_context>

<pallas_src>
import jax
import jax.numpy as jnp
from jax.experimental import pallas as pl
from jax.experimental.pallas import tpu as pltpu

_LANES = 128                    # fallback lane width
_WIDE_LANES = 1024              # preferred lane-dense slab width
_BLOCK_BYTES = 2 * 1024 * 1024  # ~2 MiB/block: 2 in-bufs + 2 out-bufs ≈ 8 MiB,
                                # under v5e's 16 MiB scoped-VMEM default
_SUBLANE_QUANTUM = 32           # row multiples of 32 pack optimally for f32/bf16/int8


def _relu_kernel(x_ref, o_ref):
    # Elementwise ReLU on one lane-dense block: single VPU max, single store
    # (keeps the lone v5e vst slot from becoming a secondary limiter).
    o_ref[...] = jnp.maximum(x_ref[...], 0)


def _relu_2d(mat: jax.Array) -> jax.Array:
    """ReLU on a lane-dense (rows, width) slab via one pallas_call."""
    rows, width = mat.shape
    dtype = mat.dtype
    itemsize = jnp.dtype(dtype).itemsize

    # Largest row block fitting the per-block byte budget, rounded down to a
    # sublane-friendly multiple of 32.
    budget_rows = max(
        _SUBLANE_QUANTUM,
        (_BLOCK_BYTES // (width * itemsize)) // _SUBLANE_QUANTUM * _SUBLANE_QUANTUM,
    )

    if rows <= budget_rows:
        block_rows = rows                      # single block == full array dims (always legal)
        grid = (1,)
    else:
        block_rows = budget_rows               # multiple of 32 -> satisfies (8,128) tiling
        grid = (pl.cdiv(rows, block_rows),)    # partial edge block is masked by Pallas

    return pl.pallas_call(
        _relu_kernel,
        out_shape=jax.ShapeDtypeStruct(mat.shape, dtype),
        grid=grid,
        in_specs=[pl.BlockSpec((block_rows, width), lambda i: (i, 0))],
        out_specs=pl.BlockSpec((block_rows, width), lambda i: (i, 0)),
        compiler_params=pltpu.CompilerParams(
            dimension_semantics=("parallel",)),  # lets v7x shard the grid over its 2 TCs
    )(mat)


def _pallas_relu(x: jax.Array) -> jax.Array:
    """Elementwise ReLU via a Pallas TPU kernel. Works for any shape/dtype."""
    orig_shape = x.shape
    n = x.size
    if n == 0:
        return x

    flat = x.reshape(-1)  # contiguous view, no HBM round trip

    if n % _WIDE_LANES == 0:
        # Preferred: wide lane-dense slab -> large unmasked vector stores.
        return _relu_2d(flat.reshape(-1, _WIDE_LANES)).reshape(orig_shape)
    if n % _LANES == 0:
        return _relu_2d(flat.reshape(-1, _LANES)).reshape(orig_shape)

    # Rare fallback: element count not a multiple of 128. Only this path pays
    # the pad + trailing-slice copies.
    pad = (-n) % _LANES
    padded = jnp.pad(flat, (0, pad))
    out = _relu_2d(padded.reshape(-1, _LANES))
    return out.reshape(-1)[:n].reshape(orig_shape)


def oct_relu(x):
    """OctReLU.forward: x = (h, l) -> (relu(h), relu(l))."""
    h, l = x
    # TODO(synk): h/l branches stay as two pallas_calls; a true single-call fusion
    # would require either a concat copy or uneven per-input grids.
    return (_pallas_relu(h), _pallas_relu(l))


if __name__ == "__main__":
    key = jax.random.PRNGKey(0)
    kh, kl = jax.random.split(key)

    # High-frequency branch: full spatial resolution; low-frequency: half.
    h = jax.random.normal(kh, (2, 4, 16, 16), dtype=jnp.float32)
    l = jax.random.normal(kl, (2, 4, 8, 8), dtype=jnp.float32)

    out_h, out_l = oct_relu((h, l))
    jax.block_until_ready(out_h)
    jax.block_until_ready(out_l)

    # Reference check against plain JAX ReLU.
    ref_h = jnp.maximum(h, 0.0)
    ref_l = jnp.maximum(l, 0.0)
    assert out_h.shape == h.shape and out_h.dtype == h.dtype
    assert out_l.shape == l.shape and out_l.dtype == l.dtype
    assert jnp.array_equal(out_h, ref_h)
    assert jnp.array_equal(out_l, ref_l)

    print("KERNEL_OK")
</pallas_src>

<mosaic_0001>
module attributes {stable_mosaic.version = 11 : i64} {
  func.func @_relu_kernel(%arg0: i32, %arg1: memref<2x1024xf32, #tpu.memory_space<vmem>>, %arg2: memref<2x1024xf32, #tpu.memory_space<vmem>>) attributes {dimension_semantics = [#tpu.dimension_semantics<parallel>], iteration_bounds = array<i64: 1>, scalar_prefetch = 0 : i64, scratch_operands = 0 : i64, tpu.core_type = #tpu.core_type<tc>, window_params = [{transform_indices = @transform_0, window_bounds = array<i64: 2, 1024>}, {transform_indices = @transform_1, window_bounds = array<i64: 2, 1024>}]} {
    %c0 = arith.constant 0 : index
    %c0_0 = arith.constant 0 : index
    %0 = vector.load %arg1[%c0, %c0_0] : memref<2x1024xf32, #tpu.memory_space<vmem>>, vector<2x1024xf32>
    %cst = arith.constant 0.000000e+00 : f32
    %1 = vector.broadcast %cst : f32 to vector<2x1024xf32>
    %2 = arith.maximumf %0, %1 : vector<2x1024xf32>
    %c0_1 = arith.constant 0 : index
    %c0_2 = arith.constant 0 : index
    %3 = vector.load %arg2[%c0_1, %c0_2] : memref<2x1024xf32, #tpu.memory_space<vmem>>, vector<2x1024xf32>
    tpu.vector_store %arg2[%c0_1, %c0_2], %2 {strides = array<i32>} : memref<2x1024xf32, #tpu.memory_space<vmem>>, vector<2x1024xf32>,
    return
  }
  func.func @transform_0(%arg0: i32) -> (i32, i32) {
    %c0_i32 = arith.constant 0 : i32
    %c0_i32_0 = arith.constant 0 : i32
    return %arg0, %c0_i32 : i32, i32
  }
  func.func @transform_1(%arg0: i32) -> (i32, i32) {
    %c0_i32 = arith.constant 0 : i32
    %c0_i32_0 = arith.constant 0 : i32
    return %arg0, %c0_i32 : i32, i32
  }
}

</mosaic_0001>

<llo_original>
// kernel: tpu_custom_call.1
$region0: #{tpu_custom_call.1}
  #allocation0 [shape = 'u32[]', space=smem, size = 0x4, offset = 0x4, fixed_abs, tag = 'smem constant byte address 0x4 - core index']
  #allocation1 [shape = 'u32[72,128]{1,0:T(1,128)}', space=vmem, size = 0x9000, scoped, tag = 'internal scratch']
  %s0 = inlined_call_operand.hbm [shape: f32[2,1024], index: 0, kind: input, shape index: {}]
  %s1 = inlined_call_operand.hbm [shape: f32[2,1024], index: 1, kind: output, shape index: {}]
  %s2 = sld [smem:[#allocation0]]
  $region18: #{tpu_custom_call.1} parent=0
    _
  %s4 = ssub.s32 1, %s2
  %s5 = scalar_select 0, %s4, %s2
  $region1: #{tpu_custom_call.1} parent=0
    #allocation2 [shape = 'u8[8192]{0}', space=vmem, size = 0x2000, scoped, tag = 'input window, operand 0, single buffered']
    #allocation3 [shape = 's32[1]{0}', space=sflag, size = 0x4, scoped, tag = 'scoped memory for tpu_custom_call.1']
    #allocation4 [shape = 's32[1]{0}', space=sflag, size = 0x4, scoped, tag = 'scoped memory for tpu_custom_call.1']
    #allocation5 [shape = 'u8[8192]{0}', space=vmem, size = 0x2000, scoped, tag = 'output window, operand 0, single buffered']
    %6 = vsyncpa [#allocation3], 0
    %7 = vsyncpa [#allocation4], 0
    // Predicated region
    $region2: #{tpu_custom_call.1} parent=1 // pred_check
      _
    $region3: #{tpu_custom_call.1} parent=1 // pred_check_branch
      %9 = sbr.rel (0) target = $region5
    $region4: #{tpu_custom_call.1} parent=1 // pred_region
      %11 = vsyncadd [#allocation3], 0
      %s13 = sshll.u32 %s0, 4
      %s14 = int_to_ptr.hbm [resolvable:$true] %s13
      %s15 = sshll.u32 [#allocation2], 4
      %s16 = int_to_ptr.vmem [resolvable:$true] %s15
      %18 = dma.hbm_to_vmem [thread:$0]  %s14, 256, %s16, [#allocation3]
    $region5: #{tpu_custom_call.1} parent=1 // pred_fallthru
      _
    // Predicated region
    $region6: #{tpu_custom_call.1} parent=1 // pred_check
      _
    $region7: #{tpu_custom_call.1} parent=1 // pred_check_branch
      %20 = sbr.rel (0) target = $region9
    $region8: #{tpu_custom_call.1} parent=1 // pred_region
      %22 = dma.done [#allocation3], 256
    $region9: #{tpu_custom_call.1} parent=1 // pred_fallthru
      _
    %v23 = vld [vmem:[#allocation2] sm:$0xff]
    %v24 = vld [vmem:[#allocation2 + $0x8] sm:$0xff]
    %v25 = vmax.f32 %v23, 0.0
    %v26 = vmax.f32 %v24, 0.0
    %27 = vst [vmem:[#allocation5] sm:$0xff] %v25
    %28 = vst [vmem:[#allocation5 + $0x8] sm:$0xff] %v26
    // Predicated region
    $region10: #{tpu_custom_call.1} parent=1 // pred_check
      _
    $region11: #{tpu_custom_call.1} parent=1 // pred_check_branch
      %30 = sbr.rel (0) target = $region13
    $region12: #{tpu_custom_call.1} parent=1 // pred_region
      %32 = vsyncadd [#allocation4], 0
      %s34 = sshll.u32 [#allocation5], 4
      %s35 = int_to_ptr.vmem [resolvable:$true] %s34
      %s36 = sshll.u32 %s1, 4
      %s37 = int_to_ptr.hbm [resolvable:$true] %s36
      %39 = dma.vmem_to_hbm [thread:$0]  %s35, 256, %s37, [#allocation4]
    $region13: #{tpu_custom_call.1} parent=1 // pred_fallthru
      _
    // Predicated region
    $region14: #{tpu_custom_call.1} parent=1 // pred_check
      _
    $region15: #{tpu_custom_call.1} parent=1 // pred_check_branch
      %41 = sbr.rel (0) target = $region17
    $region16: #{tpu_custom_call.1} parent=1 // pred_region
      %43 = dma.done [#allocation4], 256
    $region17: #{tpu_custom_call.1} parent=1 // pred_fallthru
      _
    %44 = vsyncpa [#allocation3], 1
    %45 = vsyncpa [#allocation4], 1

</llo_original>
